<compile_context>
chip_gen: v5e
topology: v5e:2x2
jax: 0.10.0
libtpu: 0.0.40
codegen_flags: <defaults>
</compile_context>

<pallas_src>
import jax
import jax.numpy as jnp
from jax.experimental import pallas as pl
from jax.experimental.pallas import tpu as pltpu


def coordatt_kernel(x_ref, ph_ref, pw_ref, eh_ref, ew_ref,
                    w1_ref, b1_ref, wh_ref, bh_ref, ww_ref, bw_ref, o_ref):
    # x_ref / o_ref: (Nb, C, H*W)   -- lane-dense minor axis (H*W)
    # ph: (H*W, H)  mean-over-W matrix     pw: (H*W, W)  mean-over-H matrix
    # eh: (H, H*W)  expand-a_h matrix      ew: (W, H*W)  expand-a_w matrix
    # w1/b1: BN-folded conv1;  wh/bh, ww/bw: conv_h / conv_w.
    nb = x_ref.shape[0]

    ph = ph_ref[...]
    pw = pw_ref[...]
    eh = eh_ref[...]
    ew = ew_ref[...]
    w1 = w1_ref[...]
    b1 = b1_ref[...]
    wh = wh_ref[...]
    bh = bh_ref[...]
    ww = ww_ref[...]
    bw = bw_ref[...]

    for b in range(nb):                      # static, small Nb
        xb = x_ref[b]                        # (C, H*W)

        # Adaptive average pools as MXU matmuls (exact means).
        pooled_h = jnp.dot(xb, ph, preferred_element_type=jnp.float32)   # (C, H)
        pooled_w = jnp.dot(xb, pw, preferred_element_type=jnp.float32)   # (C, W)

        # conv1 (1x1, BN folded) as two independent dots -- no concat/split.
        yh = jnp.dot(w1, pooled_h, preferred_element_type=jnp.float32) + b1  # (mip, H)
        yw = jnp.dot(w1, pooled_w, preferred_element_type=jnp.float32) + b1  # (mip, W)

        # h_swish: x * relu6(x + 3) / 6
        yh = yh * jnp.clip(yh + 3.0, 0.0, 6.0) * (1.0 / 6.0)
        yw = yw * jnp.clip(yw + 3.0, 0.0, 6.0) * (1.0 / 6.0)

        # conv_h / conv_w (1x1) + sigmoid.
        a_h = jax.nn.sigmoid(
            jnp.dot(wh, yh, preferred_element_type=jnp.float32) + bh)       # (oup, H)
        a_w = jax.nn.sigmoid(
            jnp.dot(ww, yw, preferred_element_type=jnp.float32) + bw)       # (oup, W)

        # Broadcast a_h / a_w over the flattened spatial axis via indicator
        # matmuls, staying lane-dense -- no (C,H,W) relayout in-kernel.
        ah_full = jnp.dot(a_h, eh, preferred_element_type=jnp.float32)      # (C, H*W)
        aw_full = jnp.dot(a_w, ew, preferred_element_type=jnp.float32)      # (C, H*W)

        # out = identity * a_w * a_h   (oup == C), stored full-lane-width.
        o_ref[b] = (xb * ah_full * aw_full).astype(o_ref.dtype)


def coord_att(x, params, *, max_batch_block=8):
    """CoordAtt forward (eval-mode BN).  x: (N, C, H, W) NCHW, float32."""
    N, C, H, W = x.shape
    (w1, b1, g, be, mu, var, wh, bh, ww, bw) = params
    oup = wh.shape[0]
    assert oup == C, "broadcast in `identity * a_w * a_h` requires oup == inp"

    # --- host-side constant folding: BatchNorm (eval) into conv1 ------------
    eps = 1e-5
    scale = g * jax.lax.rsqrt(var + eps)          # (mip, 1)
    w1f = w1 * scale                              # (mip, C)
    b1f = (b1 - mu) * scale + be                  # (mip, 1)

    # --- constant pooling / expansion matrices (flattened spatial s=h*W+w) --
    HW = H * W
    s = jnp.arange(HW)
    h_idx = jnp.arange(H)
    w_idx = jnp.arange(W)
    dt = x.dtype
    ph = ((s[:, None] // W) == h_idx[None, :]).astype(dt) * (1.0 / W)   # (HW, H)
    pw = ((s[:, None] % W) == w_idx[None, :]).astype(dt) * (1.0 / H)    # (HW, W)
    eh = ((s[None, :] // W) == h_idx[:, None]).astype(dt)               # (H, HW)
    ew = ((s[None, :] % W) == w_idx[:, None]).astype(dt)                # (W, HW)

    # --- images per grid step (amortize ~0.35us/step pipeline overhead) -----
    nb = 1
    for cand in range(min(N, max_batch_block), 0, -1):
        if N % cand == 0:
            nb = cand
            break

    # Flatten spatial (free, contiguous) so the kernel minor axis is H*W.
    x2 = x.reshape(N, C, HW)

    def const_spec(arr):
        zeros = (0,) * arr.ndim
        return pl.BlockSpec(arr.shape, lambda n, _z=zeros: _z)

    out = pl.pallas_call(
        coordatt_kernel,
        out_shape=jax.ShapeDtypeStruct((N, C, HW), x.dtype),
        grid_spec=pltpu.PrefetchScalarGridSpec(
            num_scalar_prefetch=0,
            grid=(N // nb,),
            in_specs=[
                pl.BlockSpec((nb, C, HW), lambda n: (n, 0, 0)),  # x (lane-dense)
                const_spec(ph), const_spec(pw), const_spec(eh), const_spec(ew),
                const_spec(w1f), const_spec(b1f),
                const_spec(wh), const_spec(bh),
                const_spec(ww), const_spec(bw),
            ],
            out_specs=pl.BlockSpec((nb, C, HW), lambda n: (n, 0, 0)),
        ),
        compiler_params=pltpu.CompilerParams(
            dimension_semantics=("parallel",)),
    )(x2, ph, pw, eh, ew, w1f, b1f, wh, bh, ww, bw)

    return out.reshape(N, C, H, W)


def coord_att_reference(x, params):
    """Pure-JAX reference mirroring the PyTorch forward (eval-mode BN)."""
    (w1, b1, g, be, mu, var, wh, bh, ww, bw) = params
    N, C, H, W = x.shape
    x_h = jnp.mean(x, axis=3)                    # (N, C, H)   pool_h
    x_w = jnp.mean(x, axis=2)                    # (N, C, W)   pool_w (permuted)
    y = jnp.concatenate([x_h, x_w], axis=2)      # (N, C, H+W)
    y = jnp.einsum('mc,ncs->nms', w1, y) + b1[None]
    y = (y - mu[None]) * jax.lax.rsqrt(var[None] + 1e-5) * g[None] + be[None]
    y = y * jnp.clip(y + 3.0, 0.0, 6.0) / 6.0
    yh, yw = y[:, :, :H], y[:, :, H:]
    a_h = jax.nn.sigmoid(jnp.einsum('om,nms->nos', wh, yh) + bh[None])  # (N,O,H)
    a_w = jax.nn.sigmoid(jnp.einsum('om,nms->nos', ww, yw) + bw[None])  # (N,O,W)
    return x * a_h[:, :, :, None] * a_w[:, :, None, :]


def make_params(key, inp, oup, reduction=32):
    mip = max(8, inp // reduction)
    ks = jax.random.split(key, 10)
    w1 = jax.random.normal(ks[0], (mip, inp), jnp.float32) * 0.2
    b1 = jax.random.normal(ks[1], (mip, 1), jnp.float32) * 0.1
    gamma = 1.0 + 0.1 * jax.random.normal(ks[2], (mip, 1), jnp.float32)
    beta = 0.1 * jax.random.normal(ks[3], (mip, 1), jnp.float32)
    run_mean = 0.1 * jax.random.normal(ks[4], (mip, 1), jnp.float32)
    run_var = jnp.abs(jax.random.normal(ks[5], (mip, 1), jnp.float32)) + 0.5
    wh = jax.random.normal(ks[6], (oup, mip), jnp.float32) * 0.2
    bh = jax.random.normal(ks[7], (oup, 1), jnp.float32) * 0.1
    ww = jax.random.normal(ks[8], (oup, mip), jnp.float32) * 0.2
    bw = jax.random.normal(ks[9], (oup, 1), jnp.float32) * 0.1
    return (w1, b1, gamma, beta, run_mean, run_var, wh, bh, ww, bw)


if __name__ == "__main__":
    key = jax.random.PRNGKey(0)
    k_x, k_p = jax.random.split(key)

    N, C, H, W = 2, 4, 16, 16   # inp = oup = 4, mip = max(8, 4//32) = 8
    x = jax.random.normal(k_x, (N, C, H, W), jnp.float32)
    params = make_params(k_p, inp=C, oup=C)

    out = coord_att(x, params)
    out = jax.block_until_ready(out)

    ref = coord_att_reference(x, params)
    assert out.shape == (N, C, H, W)
    assert jnp.allclose(out, ref, atol=1e-4, rtol=1e-4), "mismatch vs reference"

    print("KERNEL_OK")
</pallas_src>

<mosaic_0001>
module attributes {stable_mosaic.version = 11 : i64} {
  func.func @coordatt_kernel(%arg0: i32, %arg1: memref<2x4x256xf32, #tpu.memory_space<vmem>>, %arg2: memref<256x16xf32, #tpu.memory_space<vmem>>, %arg3: memref<256x16xf32, #tpu.memory_space<vmem>>, %arg4: memref<16x256xf32, #tpu.memory_space<vmem>>, %arg5: memref<16x256xf32, #tpu.memory_space<vmem>>, %arg6: memref<8x4xf32, #tpu.memory_space<vmem>>, %arg7: memref<8x1xf32, #tpu.memory_space<vmem>>, %arg8: memref<4x8xf32, #tpu.memory_space<vmem>>, %arg9: memref<4x1xf32, #tpu.memory_space<vmem>>, %arg10: memref<4x8xf32, #tpu.memory_space<vmem>>, %arg11: memref<4x1xf32, #tpu.memory_space<vmem>>, %arg12: memref<2x4x256xf32, #tpu.memory_space<vmem>>) attributes {dimension_semantics = [#tpu.dimension_semantics<parallel>], iteration_bounds = array<i64: 1>, scalar_prefetch = 0 : i64, scratch_operands = 0 : i64, tpu.core_type = #tpu.core_type<tc>, window_params = [{transform_indices = @transform_0, window_bounds = array<i64: 2, 4, 256>}, {pipeline_mode = #tpu.pipeline_mode<synchronous>, transform_indices = @transform_1, window_bounds = array<i64: 256, 16>}, {pipeline_mode = #tpu.pipeline_mode<synchronous>, transform_indices = @transform_2, window_bounds = array<i64: 256, 16>}, {pipeline_mode = #tpu.pipeline_mode<synchronous>, transform_indices = @transform_3, window_bounds = array<i64: 16, 256>}, {pipeline_mode = #tpu.pipeline_mode<synchronous>, transform_indices = @transform_4, window_bounds = array<i64: 16, 256>}, {pipeline_mode = #tpu.pipeline_mode<synchronous>, transform_indices = @transform_5, window_bounds = array<i64: 8, 4>}, {pipeline_mode = #tpu.pipeline_mode<synchronous>, transform_indices = @transform_6, window_bounds = array<i64: 8, 1>}, {pipeline_mode = #tpu.pipeline_mode<synchronous>, transform_indices = @transform_7, window_bounds = array<i64: 4, 8>}, {pipeline_mode = #tpu.pipeline_mode<synchronous>, transform_indices = @transform_8, window_bounds = array<i64: 4, 1>}, {pipeline_mode = #tpu.pipeline_mode<synchronous>, transform_indices = @transform_9, window_bounds = array<i64: 4, 8>}, {pipeline_mode = #tpu.pipeline_mode<synchronous>, transform_indices = @transform_10, window_bounds = array<i64: 4, 1>}, {transform_indices = @transform_11, window_bounds = array<i64: 2, 4, 256>}]} {
    %c0 = arith.constant 0 : index
    %c0_0 = arith.constant 0 : index
    %0 = vector.load %arg2[%c0, %c0_0] : memref<256x16xf32, #tpu.memory_space<vmem>>, vector<256x16xf32>
    %c0_1 = arith.constant 0 : index
    %c0_2 = arith.constant 0 : index
    %1 = vector.load %arg3[%c0_1, %c0_2] : memref<256x16xf32, #tpu.memory_space<vmem>>, vector<256x16xf32>
    %c0_3 = arith.constant 0 : index
    %c0_4 = arith.constant 0 : index
    %2 = vector.load %arg4[%c0_3, %c0_4] : memref<16x256xf32, #tpu.memory_space<vmem>>, vector<16x256xf32>
    %c0_5 = arith.constant 0 : index
    %c0_6 = arith.constant 0 : index
    %3 = vector.load %arg5[%c0_5, %c0_6] : memref<16x256xf32, #tpu.memory_space<vmem>>, vector<16x256xf32>
    %c0_7 = arith.constant 0 : index
    %c0_8 = arith.constant 0 : index
    %4 = vector.load %arg6[%c0_7, %c0_8] : memref<8x4xf32, #tpu.memory_space<vmem>>, vector<8x4xf32>
    %c0_9 = arith.constant 0 : index
    %c0_10 = arith.constant 0 : index
    %5 = vector.load %arg7[%c0_9, %c0_10] : memref<8x1xf32, #tpu.memory_space<vmem>>, vector<8x1xf32>
    %c0_11 = arith.constant 0 : index
    %c0_12 = arith.constant 0 : index
    %6 = vector.load %arg8[%c0_11, %c0_12] : memref<4x8xf32, #tpu.memory_space<vmem>>, vector<4x8xf32>
    %c0_13 = arith.constant 0 : index
    %c0_14 = arith.constant 0 : index
    %7 = vector.load %arg9[%c0_13, %c0_14] : memref<4x1xf32, #tpu.memory_space<vmem>>, vector<4x1xf32>
    %c0_15 = arith.constant 0 : index
    %c0_16 = arith.constant 0 : index
    %8 = vector.load %arg10[%c0_15, %c0_16] : memref<4x8xf32, #tpu.memory_space<vmem>>, vector<4x8xf32>
    %c0_17 = arith.constant 0 : index
    %c0_18 = arith.constant 0 : index
    %9 = vector.load %arg11[%c0_17, %c0_18] : memref<4x1xf32, #tpu.memory_space<vmem>>, vector<4x1xf32>
    %c0_19 = arith.constant 0 : index
    %c0_20 = arith.constant 0 : index
    %c0_21 = arith.constant 0 : index
    %10 = vector.load %arg1[%c0_19, %c0_20, %c0_21] : memref<2x4x256xf32, #tpu.memory_space<vmem>>, vector<1x4x256xf32>
    %11 = vector.shape_cast %10 : vector<1x4x256xf32> to vector<4x256xf32>
    %cst = arith.constant dense<0.000000e+00> : vector<4x16xf32>
    %12 = tpu.matmul %11, %0, %cst {dimension_numbers = #tpu.dot_dimension_numbers<[1], [0], [0], [1], [0, 0, 1, 1], [], []>} : vector<4x256xf32>, vector<256x16xf32>, vector<4x16xf32> -> vector<4x16xf32>
    %cst_22 = arith.constant dense<0.000000e+00> : vector<4x16xf32>
    %13 = tpu.matmul %11, %1, %cst_22 {dimension_numbers = #tpu.dot_dimension_numbers<[1], [0], [0], [1], [0, 0, 1, 1], [], []>} : vector<4x256xf32>, vector<256x16xf32>, vector<4x16xf32> -> vector<4x16xf32>
    %cst_23 = arith.constant dense<0.000000e+00> : vector<8x16xf32>
    %14 = tpu.matmul %4, %12, %cst_23 {dimension_numbers = #tpu.dot_dimension_numbers<[1], [0], [0], [1], [0, 0, 1, 1], [], []>} : vector<8x4xf32>, vector<4x16xf32>, vector<8x16xf32> -> vector<8x16xf32>
    %15 = vector.broadcast %5 : vector<8x1xf32> to vector<8x16xf32>
    %16 = arith.addf %14, %15 : vector<8x16xf32>
    %cst_24 = arith.constant dense<0.000000e+00> : vector<8x16xf32>
    %17 = tpu.matmul %4, %13, %cst_24 {dimension_numbers = #tpu.dot_dimension_numbers<[1], [0], [0], [1], [0, 0, 1, 1], [], []>} : vector<8x4xf32>, vector<4x16xf32>, vector<8x16xf32> -> vector<8x16xf32>
    %18 = vector.broadcast %5 : vector<8x1xf32> to vector<8x16xf32>
    %19 = arith.addf %17, %18 : vector<8x16xf32>
    %cst_25 = arith.constant 3.000000e+00 : f32
    %20 = vector.broadcast %cst_25 : f32 to vector<8x16xf32>
    %21 = arith.addf %16, %20 : vector<8x16xf32>
    %cst_26 = arith.constant 0.000000e+00 : f32
    %cst_27 = arith.constant 6.000000e+00 : f32
    %22 = vector.broadcast %cst_26 : f32 to vector<8x16xf32>
    %23 = arith.maximumf %22, %21 : vector<8x16xf32>
    %24 = vector.broadcast %cst_27 : f32 to vector<8x16xf32>
    %25 = arith.minimumf %24, %23 : vector<8x16xf32>
    %26 = arith.mulf %16, %25 : vector<8x16xf32>
    %cst_28 = arith.constant 0.166666672 : f32
    %27 = vector.broadcast %cst_28 : f32 to vector<8x16xf32>
    %28 = arith.mulf %26, %27 : vector<8x16xf32>
    %cst_29 = arith.constant 3.000000e+00 : f32
    %29 = vector.broadcast %cst_29 : f32 to vector<8x16xf32>
    %30 = arith.addf %19, %29 : vector<8x16xf32>
    %cst_30 = arith.constant 0.000000e+00 : f32
    %cst_31 = arith.constant 6.000000e+00 : f32
    %31 = vector.broadcast %cst_30 : f32 to vector<8x16xf32>
    %32 = arith.maximumf %31, %30 : vector<8x16xf32>
    %33 = vector.broadcast %cst_31 : f32 to vector<8x16xf32>
    %34 = arith.minimumf %33, %32 : vector<8x16xf32>
    %35 = arith.mulf %19, %34 : vector<8x16xf32>
    %cst_32 = arith.constant 0.166666672 : f32
    %36 = vector.broadcast %cst_32 : f32 to vector<8x16xf32>
    %37 = arith.mulf %35, %36 : vector<8x16xf32>
    %cst_33 = arith.constant dense<0.000000e+00> : vector<4x16xf32>
    %38 = tpu.matmul %6, %28, %cst_33 {dimension_numbers = #tpu.dot_dimension_numbers<[1], [0], [0], [1], [0, 0, 1, 1], [], []>} : vector<4x8xf32>, vector<8x16xf32>, vector<4x16xf32> -> vector<4x16xf32>
    %39 = vector.broadcast %7 : vector<4x1xf32> to vector<4x16xf32>
    %40 = arith.addf %38, %39 : vector<4x16xf32>
    %41 = arith.negf %40 : vector<4x16xf32>
    %42 = math.exp %41 : vector<4x16xf32>
    %cst_34 = arith.constant 1.000000e+00 : f32
    %43 = vector.broadcast %cst_34 : f32 to vector<4x16xf32>
    %44 = arith.addf %43, %42 : vector<4x16xf32>
    %45 = arith.divf %43, %44 : vector<4x16xf32>
    %cst_35 = arith.constant dense<0.000000e+00> : vector<4x16xf32>
    %46 = tpu.matmul %8, %37, %cst_35 {dimension_numbers = #tpu.dot_dimension_numbers<[1], [0], [0], [1], [0, 0, 1, 1], [], []>} : vector<4x8xf32>, vector<8x16xf32>, vector<4x16xf32> -> vector<4x16xf32>
    %47 = vector.broadcast %9 : vector<4x1xf32> to vector<4x16xf32>
    %48 = arith.addf %46, %47 : vector<4x16xf32>
    %49 = arith.negf %48 : vector<4x16xf32>
    %50 = math.exp %49 : vector<4x16xf32>
    %cst_36 = arith.constant 1.000000e+00 : f32
    %51 = vector.broadcast %cst_36 : f32 to vector<4x16xf32>
    %52 = arith.addf %51, %50 : vector<4x16xf32>
    %53 = arith.divf %51, %52 : vector<4x16xf32>
    %cst_37 = arith.constant dense<0.000000e+00> : vector<4x256xf32>
    %54 = tpu.matmul %45, %2, %cst_37 {dimension_numbers = #tpu.dot_dimension_numbers<[1], [0], [0], [1], [0, 0, 1, 1], [], []>} : vector<4x16xf32>, vector<16x256xf32>, vector<4x256xf32> -> vector<4x256xf32>
    %cst_38 = arith.constant dense<0.000000e+00> : vector<4x256xf32>
    %55 = tpu.matmul %53, %3, %cst_38 {dimension_numbers = #tpu.dot_dimension_numbers<[1], [0], [0], [1], [0, 0, 1, 1], [], []>} : vector<4x16xf32>, vector<16x256xf32>, vector<4x256xf32> -> vector<4x256xf32>
    %56 = arith.mulf %11, %54 : vector<4x256xf32>
    %57 = arith.mulf %56, %55 : vector<4x256xf32>
    %c0_39 = arith.constant 0 : index
    %c0_40 = arith.constant 0 : index
    %c0_41 = arith.constant 0 : index
    %58 = vector.load %arg12[%c0_39, %c0_40, %c0_41] : memref<2x4x256xf32, #tpu.memory_space<vmem>>, vector<1x4x256xf32>
    %59 = vector.shape_cast %58 : vector<1x4x256xf32> to vector<4x256xf32>
    %60 = vector.shape_cast %57 : vector<4x256xf32> to vector<1x4x256xf32>
    tpu.vector_store %arg12[%c0_39, %c0_40, %c0_41], %60 {strides = array<i32>} : memref<2x4x256xf32, #tpu.memory_space<vmem>>, vector<1x4x256xf32>,
    %c1 = arith.constant 1 : index
    %c0_42 = arith.constant 0 : index
    %c0_43 = arith.constant 0 : index
    %61 = vector.load %arg1[%c1, %c0_42, %c0_43] : memref<2x4x256xf32, #tpu.memory_space<vmem>>, vector<1x4x256xf32>
    %62 = vector.shape_cast %61 : vector<1x4x256xf32> to vector<4x256xf32>
    %cst_44 = arith.constant dense<0.000000e+00> : vector<4x16xf32>
    %63 = tpu.matmul %62, %0, %cst_44 {dimension_numbers = #tpu.dot_dimension_numbers<[1], [0], [0], [1], [0, 0, 1, 1], [], []>} : vector<4x256xf32>, vector<256x16xf32>, vector<4x16xf32> -> vector<4x16xf32>
    %cst_45 = arith.constant dense<0.000000e+00> : vector<4x16xf32>
    %64 = tpu.matmul %62, %1, %cst_45 {dimension_numbers = #tpu.dot_dimension_numbers<[1], [0], [0], [1], [0, 0, 1, 1], [], []>} : vector<4x256xf32>, vector<256x16xf32>, vector<4x16xf32> -> vector<4x16xf32>
    %cst_46 = arith.constant dense<0.000000e+00> : vector<8x16xf32>
    %65 = tpu.matmul %4, %63, %cst_46 {dimension_numbers = #tpu.dot_dimension_numbers<[1], [0], [0], [1], [0, 0, 1, 1], [], []>} : vector<8x4xf32>, vector<4x16xf32>, vector<8x16xf32> -> vector<8x16xf32>
    %66 = vector.broadcast %5 : vector<8x1xf32> to vector<8x16xf32>
    %67 = arith.addf %65, %66 : vector<8x16xf32>
    %cst_47 = arith.constant dense<0.000000e+00> : vector<8x16xf32>
    %68 = tpu.matmul %4, %64, %cst_47 {dimension_numbers = #tpu.dot_dimension_numbers<[1], [0], [0], [1], [0, 0, 1, 1], [], []>} : vector<8x4xf32>, vector<4x16xf32>, vector<8x16xf32> -> vector<8x16xf32>
    %69 = vector.broadcast %5 : vector<8x1xf32> to vector<8x16xf32>
    %70 = arith.addf %68, %69 : vector<8x16xf32>
    %cst_48 = arith.constant 3.000000e+00 : f32
    %71 = vector.broadcast %cst_48 : f32 to vector<8x16xf32>
    %72 = arith.addf %67, %71 : vector<8x16xf32>
    %cst_49 = arith.constant 0.000000e+00 : f32
    %cst_50 = arith.constant 6.000000e+00 : f32
    %73 = vector.broadcast %cst_49 : f32 to vector<8x16xf32>
    %74 = arith.maximumf %73, %72 : vector<8x16xf32>
    %75 = vector.broadcast %cst_50 : f32 to vector<8x16xf32>
    %76 = arith.minimumf %75, %74 : vector<8x16xf32>
    %77 = arith.mulf %67, %76 : vector<8x16xf32>
    %cst_51 = arith.constant 0.166666672 : f32
    %78 = vector.broadcast %cst_51 : f32 to vector<8x16xf32>
    %79 = arith.mulf %77, %78 : vector<8x16xf32>
    %cst_52 = arith.constant 3.000000e+00 : f32
    %80 = vector.broadcast %cst_52 : f32 to vector<8x16xf32>
    %81 = arith.addf %70, %80 : vector<8x16xf32>
    %cst_53 = arith.constant 0.000000e+00 : f32
    %cst_54 = arith.constant 6.000000e+00 : f32
    %82 = vector.broadcast %cst_53 : f32 to vector<8x16xf32>
    %83 = arith.maximumf %82, %81 : vector<8x16xf32>
    %84 = vector.broadcast %cst_54 : f32 to vector<8x16xf32>
    %85 = arith.minimumf %84, %83 : vector<8x16xf32>
    %86 = arith.mulf %70, %85 : vector<8x16xf32>
    %cst_55 = arith.constant 0.166666672 : f32
    %87 = vector.broadcast %cst_55 : f32 to vector<8x16xf32>
    %88 = arith.mulf %86, %87 : vector<8x16xf32>
    %cst_56 = arith.constant dense<0.000000e+00> : vector<4x16xf32>
    %89 = tpu.matmul %6, %79, %cst_56 {dimension_numbers = #tpu.dot_dimension_numbers<[1], [0], [0], [1], [0, 0, 1, 1], [], []>} : vector<4x8xf32>, vector<8x16xf32>, vector<4x16xf32> -> vector<4x16xf32>
    %90 = vector.broadcast %7 : vector<4x1xf32> to vector<4x16xf32>
    %91 = arith.addf %89, %90 : vector<4x16xf32>
    %92 = arith.negf %91 : vector<4x16xf32>
    %93 = math.exp %92 : vector<4x16xf32>
    %cst_57 = arith.constant 1.000000e+00 : f32
    %94 = vector.broadcast %cst_57 : f32 to vector<4x16xf32>
    %95 = arith.addf %94, %93 : vector<4x16xf32>
    %96 = arith.divf %94, %95 : vector<4x16xf32>
    %cst_58 = arith.constant dense<0.000000e+00> : vector<4x16xf32>
    %97 = tpu.matmul %8, %88, %cst_58 {dimension_numbers = #tpu.dot_dimension_numbers<[1], [0], [0], [1], [0, 0, 1, 1], [], []>} : vector<4x8xf32>, vector<8x16xf32>, vector<4x16xf32> -> vector<4x16xf32>
    %98 = vector.broadcast %9 : vector<4x1xf32> to vector<4x16xf32>
    %99 = arith.addf %97, %98 : vector<4x16xf32>
    %100 = arith.negf %99 : vector<4x16xf32>
    %101 = math.exp %100 : vector<4x16xf32>
    %cst_59 = arith.constant 1.000000e+00 : f32
    %102 = vector.broadcast %cst_59 : f32 to vector<4x16xf32>
    %103 = arith.addf %102, %101 : vector<4x16xf32>
    %104 = arith.divf %102, %103 : vector<4x16xf32>
    %cst_60 = arith.constant dense<0.000000e+00> : vector<4x256xf32>
    %105 = tpu.matmul %96, %2, %cst_60 {dimension_numbers = #tpu.dot_dimension_numbers<[1], [0], [0], [1], [0, 0, 1, 1], [], []>} : vector<4x16xf32>, vector<16x256xf32>, vector<4x256xf32> -> vector<4x256xf32>
    %cst_61 = arith.constant dense<0.000000e+00> : vector<4x256xf32>
    %106 = tpu.matmul %104, %3, %cst_61 {dimension_numbers = #tpu.dot_dimension_numbers<[1], [0], [0], [1], [0, 0, 1, 1], [], []>} : vector<4x16xf32>, vector<16x256xf32>, vector<4x256xf32> -> vector<4x256xf32>
    %107 = arith.mulf %62, %105 : vector<4x256xf32>
    %108 = arith.mulf %107, %106 : vector<4x256xf32>
    %c1_62 = arith.constant 1 : index
    %c0_63 = arith.constant 0 : index
    %c0_64 = arith.constant 0 : index
    %109 = vector.load %arg12[%c1_62, %c0_63, %c0_64] : memref<2x4x256xf32, #tpu.memory_space<vmem>>, vector<1x4x256xf32>
    %110 = vector.shape_cast %109 : vector<1x4x256xf32> to vector<4x256xf32>
    %111 = vector.shape_cast %108 : vector<4x256xf32> to vector<1x4x256xf32>
    tpu.vector_store %arg12[%c1_62, %c0_63, %c0_64], %111 {strides = array<i32>} : memref<2x4x256xf32, #tpu.memory_space<vmem>>, vector<1x4x256xf32>,
    return
  }
  func.func @transform_0(%arg0: i32) -> (i32, i32, i32) {
    %c0_i32 = arith.constant 0 : i32
    %c0_i32_0 = arith.constant 0 : i32
    %c0_i32_1 = arith.constant 0 : i32
    return %arg0, %c0_i32, %c0_i32_0 : i32, i32, i32
  }
  func.func @transform_1(%arg0: i32) -> (i32, i32) {
    %c0_i32 = arith.constant 0 : i32
    %c0_i32_0 = arith.constant 0 : i32
    %c0_i32_1 = arith.constant 0 : i32
    return %c0_i32, %c0_i32_0 : i32, i32
  }
  func.func @transform_2(%arg0: i32) -> (i32, i32) {
    %c0_i32 = arith.constant 0 : i32
    %c0_i32_0 = arith.constant 0 : i32
    %c0_i32_1 = arith.constant 0 : i32
    return %c0_i32, %c0_i32_0 : i32, i32
  }
  func.func @transform_3(%arg0: i32) -> (i32, i32) {
    %c0_i32 = arith.constant 0 : i32
    %c0_i32_0 = arith.constant 0 : i32
    %c0_i32_1 = arith.constant 0 : i32
    return %c0_i32, %c0_i32_0 : i32, i32
  }
  func.func @transform_4(%arg0: i32) -> (i32, i32) {
    %c0_i32 = arith.constant 0 : i32
    %c0_i32_0 = arith.constant 0 : i32
    %c0_i32_1 = arith.constant 0 : i32
    return %c0_i32, %c0_i32_0 : i32, i32
  }
  func.func @transform_5(%arg0: i32) -> (i32, i32) {
    %c0_i32 = arith.constant 0 : i32
    %c0_i32_0 = arith.constant 0 : i32
    %c0_i32_1 = arith.constant 0 : i32
    return %c0_i32, %c0_i32_0 : i32, i32
  }
  func.func @transform_6(%arg0: i32) -> (i32, i32) {
    %c0_i32 = arith.constant 0 : i32
    %c0_i32_0 = arith.constant 0 : i32
    %c0_i32_1 = arith.constant 0 : i32
    return %c0_i32, %c0_i32_0 : i32, i32
  }
  func.func @transform_7(%arg0: i32) -> (i32, i32) {
    %c0_i32 = arith.constant 0 : i32
    %c0_i32_0 = arith.constant 0 : i32
    %c0_i32_1 = arith.constant 0 : i32
    return %c0_i32, %c0_i32_0 : i32, i32
  }
  func.func @transform_8(%arg0: i32) -> (i32, i32) {
    %c0_i32 = arith.constant 0 : i32
    %c0_i32_0 = arith.constant 0 : i32
    %c0_i32_1 = arith.constant 0 : i32
    return %c0_i32, %c0_i32_0 : i32, i32
  }
  func.func @transform_9(%arg0: i32) -> (i32, i32) {
    %c0_i32 = arith.constant 0 : i32
    %c0_i32_0 = arith.constant 0 : i32
    %c0_i32_1 = arith.constant 0 : i32
    return %c0_i32, %c0_i32_0 : i32, i32
  }
  func.func @transform_10(%arg0: i32) -> (i32, i32) {
    %c0_i32 = arith.constant 0 : i32
    %c0_i32_0 = arith.constant 0 : i32
    %c0_i32_1 = arith.constant 0 : i32
    return %c0_i32, %c0_i32_0 : i32, i32
  }
  func.func @transform_11(%arg0: i32) -> (i32, i32, i32) {
    %c0_i32 = arith.constant 0 : i32
    %c0_i32_0 = arith.constant 0 : i32
    %c0_i32_1 = arith.constant 0 : i32
    return %arg0, %c0_i32, %c0_i32_0 : i32, i32, i32
  }
}

</mosaic_0001>

<llo_original>
// kernel: tpu_custom_call.1
$region0: #{tpu_custom_call.1}
  #allocation0 [shape = 'u32[]', space=smem, size = 0x4, offset = 0x4, fixed_abs, tag = 'smem constant byte address 0x4 - core index']
  #allocation1 [shape = 'u32[72,128]{1,0:T(1,128)}', space=vmem, size = 0x9000, scoped, tag = 'internal scratch']
  %s0 = inlined_call_operand.vmem [shape: f32[2,4,256], index: 0, kind: input, shape index: {}]
  %s1 = inlined_call_operand.vmem [shape: f32[256,16], index: 1, kind: input, shape index: {}]
  %s2 = inlined_call_operand.vmem [shape: f32[256,16], index: 2, kind: input, shape index: {}]
  %s3 = inlined_call_operand.vmem [shape: f32[16,256], index: 3, kind: input, shape index: {}]
  %s4 = inlined_call_operand.vmem [shape: f32[16,256], index: 4, kind: input, shape index: {}]
  %s5 = inlined_call_operand.vmem [shape: f32[8,4], index: 5, kind: input, shape index: {}]
  %s6 = inlined_call_operand.vmem [shape: f32[8,1], index: 6, kind: input, shape index: {}]
  %s7 = inlined_call_operand.vmem [shape: f32[4,8], index: 7, kind: input, shape index: {}]
  %s8 = inlined_call_operand.vmem [shape: f32[4,1], index: 8, kind: input, shape index: {}]
  %s9 = inlined_call_operand.vmem [shape: f32[4,8], index: 9, kind: input, shape index: {}]
  %s10 = inlined_call_operand.vmem [shape: f32[4,1], index: 10, kind: input, shape index: {}]
  %s11 = inlined_call_operand.hbm [shape: f32[2,4,256], index: 11, kind: output, shape index: {}]
  %s12 = sld [smem:[#allocation0]]
  $region54: #{tpu_custom_call.1} parent=0
    _
  %s14 = ssub.s32 1, %s12
  %s15 = scalar_select 0, %s14, %s12
  $region1: #{tpu_custom_call.1} parent=0
    #allocation2 [shape = 'u8[8192]{0}', space=vmem, size = 0x2000, scoped, tag = 'output window, operand 0, single buffered']
    #allocation3 [shape = 's32[1]{0}', space=sflag, size = 0x4, scoped, tag = 'scoped memory for tpu_custom_call.1']
    %16 = vsyncpa [#allocation3], 0
    // Predicated region
    $region2: #{tpu_custom_call.1} parent=1 // pred_check
      _
    $region3: #{tpu_custom_call.1} parent=1 // pred_check_branch
      %18 = sbr.rel (0) target = $region5
    $region4: #{tpu_custom_call.1} parent=1 // pred_region
      _
    $region5: #{tpu_custom_call.1} parent=1 // pred_fallthru
      _
    // Predicated region
    $region6: #{tpu_custom_call.1} parent=1 // pred_check
      _
    $region7: #{tpu_custom_call.1} parent=1 // pred_check_branch
      %20 = sbr.rel (0) target = $region9
    $region8: #{tpu_custom_call.1} parent=1 // pred_region
      _
    $region9: #{tpu_custom_call.1} parent=1 // pred_fallthru
      _
    // Predicated region
    $region10: #{tpu_custom_call.1} parent=1 // pred_check
      _
    $region11: #{tpu_custom_call.1} parent=1 // pred_check_branch
      %22 = sbr.rel (0) target = $region13
    $region12: #{tpu_custom_call.1} parent=1 // pred_region
      _
    $region13: #{tpu_custom_call.1} parent=1 // pred_fallthru
      _
    // Predicated region
    $region14: #{tpu_custom_call.1} parent=1 // pred_check
      _
    $region15: #{tpu_custom_call.1} parent=1 // pred_check_branch
      %24 = sbr.rel (0) target = $region17
    $region16: #{tpu_custom_call.1} parent=1 // pred_region
      _
    $region17: #{tpu_custom_call.1} parent=1 // pred_fallthru
      _
    // Predicated region
    $region18: #{tpu_custom_call.1} parent=1 // pred_check
      _
    $region19: #{tpu_custom_call.1} parent=1 // pred_check_branch
      %26 = sbr.rel (0) target = $region21
    $region20: #{tpu_custom_call.1} parent=1 // pred_region
      _
    $region21: #{tpu_custom_call.1} parent=1 // pred_fallthru
      _
    // Predicated region
    $region22: #{tpu_custom_call.1} parent=1 // pred_check
      _
    $region23: #{tpu_custom_call.1} parent=1 // pred_check_branch
      %28 = sbr.rel (0) target = $region25
    $region24: #{tpu_custom_call.1} parent=1 // pred_region
      _
    $region25: #{tpu_custom_call.1} parent=1 // pred_fallthru
      _
    // Predicated region
    $region26: #{tpu_custom_call.1} parent=1 // pred_check
      _
    $region27: #{tpu_custom_call.1} parent=1 // pred_check_branch
      %30 = sbr.rel (0) target = $region29
    $region28: #{tpu_custom_call.1} parent=1 // pred_region
      _
    $region29: #{tpu_custom_call.1} parent=1 // pred_fallthru
      _
    // Predicated region
    $region30: #{tpu_custom_call.1} parent=1 // pred_check
      _
    $region31: #{tpu_custom_call.1} parent=1 // pred_check_branch
      %32 = sbr.rel (0) target = $region33
    $region32: #{tpu_custom_call.1} parent=1 // pred_region
      _
    $region33: #{tpu_custom_call.1} parent=1 // pred_fallthru
      _
    // Predicated region
    $region34: #{tpu_custom_call.1} parent=1 // pred_check
      _
    $region35: #{tpu_custom_call.1} parent=1 // pred_check_branch
      %34 = sbr.rel (0) target = $region37
    $region36: #{tpu_custom_call.1} parent=1 // pred_region
      _
    $region37: #{tpu_custom_call.1} parent=1 // pred_fallthru
      _
    // Predicated region
    $region38: #{tpu_custom_call.1} parent=1 // pred_check
      _
    $region39: #{tpu_custom_call.1} parent=1 // pred_check_branch
      %36 = sbr.rel (0) target = $region41
    $region40: #{tpu_custom_call.1} parent=1 // pred_region
      _
    $region41: #{tpu_custom_call.1} parent=1 // pred_fallthru
      _
    // Predicated region
    $region42: #{tpu_custom_call.1} parent=1 // pred_check
      _
    $region43: #{tpu_custom_call.1} parent=1 // pred_check_branch
      %38 = sbr.rel (0) target = $region45
    $region44: #{tpu_custom_call.1} parent=1 // pred_region
      _
    $region45: #{tpu_custom_call.1} parent=1 // pred_fallthru
      _
    %v39 = vld [vmem:[%s1] sm:$0xff]
    %v40 = vld [vmem:[%s1 + $0x8] sm:$0xff]
    %v41 = vld [vmem:[%s1 + $0x10] sm:$0xff]
    %v42 = vld [vmem:[%s1 + $0x18] sm:$0xff]
    %v43 = vld [vmem:[%s1 + $0x20] sm:$0xff]
    %v44 = vld [vmem:[%s1 + $0x28] sm:$0xff]
    %v45 = vld [vmem:[%s1 + $0x30] sm:$0xff]
    %v46 = vld [vmem:[%s1 + $0x38] sm:$0xff]
    %v47 = vld [vmem:[%s1 + $0x40] sm:$0xff]
    %v48 = vld [vmem:[%s1 + $0x48] sm:$0xff]
    %v49 = vld [vmem:[%s1 + $0x50] sm:$0xff]
    %v50 = vld [vmem:[%s1 + $0x58] sm:$0xff]
    %v51 = vld [vmem:[%s1 + $0x60] sm:$0xff]
    %v52 = vld [vmem:[%s1 + $0x68] sm:$0xff]
    %v53 = vld [vmem:[%s1 + $0x70] sm:$0xff]
    %v54 = vld [vmem:[%s1 + $0x78] sm:$0xff]
    %v55 = vld [vmem:[%s1 + $0x80] sm:$0xff]
    %v56 = vld [vmem:[%s1 + $0x88] sm:$0xff]
    %v57 = vld [vmem:[%s1 + $0x90] sm:$0xff]
    %v58 = vld [vmem:[%s1 + $0x98] sm:$0xff]
    %v59 = vld [vmem:[%s1 + $0xa0] sm:$0xff]
    %v60 = vld [vmem:[%s1 + $0xa8] sm:$0xff]
    %v61 = vld [vmem:[%s1 + $0xb0] sm:$0xff]
    %v62 = vld [vmem:[%s1 + $0xb8] sm:$0xff]
    %v63 = vld [vmem:[%s1 + $0xc0] sm:$0xff]
    %v64 = vld [vmem:[%s1 + $0xc8] sm:$0xff]
    %v65 = vld [vmem:[%s1 + $0xd0] sm:$0xff]
    %v66 = vld [vmem:[%s1 + $0xd8] sm:$0xff]
    %v67 = vld [vmem:[%s1 + $0xe0] sm:$0xff]
    %v68 = vld [vmem:[%s1 + $0xe8] sm:$0xff]
    %v69 = vld [vmem:[%s1 + $0xf0] sm:$0xff]
    %v70 = vld [vmem:[%s1 + $0xf8] sm:$0xff]
    %v71 = vld [vmem:[%s2] sm:$0xff]
    %v72 = vld [vmem:[%s2 + $0x8] sm:$0xff]
    %v73 = vld [vmem:[%s2 + $0x10] sm:$0xff]
    %v74 = vld [vmem:[%s2 + $0x18] sm:$0xff]
    %v75 = vld [vmem:[%s2 + $0x20] sm:$0xff]
    %v76 = vld [vmem:[%s2 + $0x28] sm:$0xff]
    %v77 = vld [vmem:[%s2 + $0x30] sm:$0xff]
    %v78 = vld [vmem:[%s2 + $0x38] sm:$0xff]
    %v79 = vld [vmem:[%s2 + $0x40] sm:$0xff]
    %v80 = vld [vmem:[%s2 + $0x48] sm:$0xff]
    %v81 = vld [vmem:[%s2 + $0x50] sm:$0xff]
    %v82 = vld [vmem:[%s2 + $0x58] sm:$0xff]
    %v83 = vld [vmem:[%s2 + $0x60] sm:$0xff]
    %v84 = vld [vmem:[%s2 + $0x68] sm:$0xff]
    %v85 = vld [vmem:[%s2 + $0x70] sm:$0xff]
    %v86 = vld [vmem:[%s2 + $0x78] sm:$0xff]
    %v87 = vld [vmem:[%s2 + $0x80] sm:$0xff]
    %v88 = vld [vmem:[%s2 + $0x88] sm:$0xff]
    %v89 = vld [vmem:[%s2 + $0x90] sm:$0xff]
    %v90 = vld [vmem:[%s2 + $0x98] sm:$0xff]
    %v91 = vld [vmem:[%s2 + $0xa0] sm:$0xff]
    %v92 = vld [vmem:[%s2 + $0xa8] sm:$0xff]
    %v93 = vld [vmem:[%s2 + $0xb0] sm:$0xff]
    %v94 = vld [vmem:[%s2 + $0xb8] sm:$0xff]
    %v95 = vld [vmem:[%s2 + $0xc0] sm:$0xff]
    %v96 = vld [vmem:[%s2 + $0xc8] sm:$0xff]
    %v97 = vld [vmem:[%s2 + $0xd0] sm:$0xff]
    %v98 = vld [vmem:[%s2 + $0xd8] sm:$0xff]
    %v99 = vld [vmem:[%s2 + $0xe0] sm:$0xff]
    %v100 = vld [vmem:[%s2 + $0xe8] sm:$0xff]
    %v101 = vld [vmem:[%s2 + $0xf0] sm:$0xff]
    %v102 = vld [vmem:[%s2 + $0xf8] sm:$0xff]
    %v103 = vld [vmem:[%s3] sm:$0xff]
    %v104 = vld [vmem:[%s3 + $0x8] sm:$0xff]
    %v105 = vld [vmem:[%s3 + $0x10] sm:$0xff]
    %v106 = vld [vmem:[%s3 + $0x18] sm:$0xff]
    %v107 = vld [vmem:[%s4] sm:$0xff]
    %v108 = vld [vmem:[%s4 + $0x8] sm:$0xff]
    %v109 = vld [vmem:[%s4 + $0x10] sm:$0xff]
    %v110 = vld [vmem:[%s4 + $0x18] sm:$0xff]
    %v111 = vld [vmem:[%s5] sm:$0xff]
    %v112 = vld [vmem:[%s6] sm:$0xff]
    %v113 = vld [vmem:[%s7] sm:$0xf]
    %v114 = vld [vmem:[%s8] sm:$0xf]
    %v115 = vld [vmem:[%s9] sm:$0xf]
    %v116 = vld [vmem:[%s10] sm:$0xf]
    %v117 = vld [vmem:[%s0] sm:$0xff]
    %119 = vst [vmem:[#allocation1] ss:$2 sm:$0xff] %v117
    %v120 = vld.sshfl [vmem:[#allocation1] sm:$0xff pattern:$0x75316420]
    %v121 = vld.sshfl [vmem:[#allocation1 + $0x8] sm:$0xff pattern:$0x75316420]
    %124 = vmatpush.msra.mxu0 %v54
    %125 = vmatpush.msra.mxu0 %v53
    %126 = vmatpush.msra.mxu0 %v52
    %127 = vmatpush.msra.mxu0 %v51
    %128 = vmatpush.msra.mxu0 %v50
    %129 = vmatpush.msra.mxu0 %v49
    %130 = vmatpush.msra.mxu0 %v48
    %131 = vmatpush.msra.mxu0 %v47
    %132 = vmatpush.msra.mxu0 %v46
    %133 = vmatpush.msra.mxu0 %v45
    %134 = vmatpush.msra.mxu0 %v44
    %135 = vmatpush.msra.mxu0 %v43
    %136 = vmatpush.msra.mxu0 %v42
    %137 = vmatpush.msra.mxu0 %v41
    %138 = vmatpush.msra.mxu0 %v40
    %139 = vmatpush.msra.mxu0 %v39
    %140 = vmatmul.f32.gmra.mxu0 %v120
    %v141 = vpop.f32.mrf.mxu0
    %v142 = vadd.f32 0.0, %v141
    %143 = vdwg.mxu0
    %144 = vmatpush.msra.mxu0 %v70
    %145 = vmatpush.msra.mxu0 %v69
    %146 = vmatpush.msra.mxu0 %v68
    %147 = vmatpush.msra.mxu0 %v67
    %148 = vmatpush.msra.mxu0 %v66
    %149 = vmatpush.msra.mxu0 %v65
    %150 = vmatpush.msra.mxu0 %v64
    %151 = vmatpush.msra.mxu0 %v63
    %152 = vmatpush.msra.mxu0 %v62
    %153 = vmatpush.msra.mxu0 %v61
    %154 = vmatpush.msra.mxu0 %v60
    %155 = vmatpush.msra.mxu0 %v59
    %156 = vmatpush.msra.mxu0 %v58
    %157 = vmatpush.msra.mxu0 %v57
    %158 = vmatpush.msra.mxu0 %v56
    %159 = vmatpush.msra.mxu0 %v55
    %160 = vmatmul.f32.gmra.mxu0 %v121
    %v161 = vpop.f32.mrf.mxu0
    %v162 = vadd.f32 %v142, %v161
    %163 = vdwg.mxu0
    %164 = vst [vmem:[#allocation1] ss:$2 sm:$0xff] %v117
    %v165 = vld.sshfl [vmem:[#allocation1] sm:$0xff pattern:$0x75316420]
    %v166 = vld.sshfl [vmem:[#allocation1 + $0x8] sm:$0xff pattern:$0x75316420]
    %169 = vmatpush.msra.mxu0 %v86
    %170 = vmatpush.msra.mxu0 %v85
    %171 = vmatpush.msra.mxu0 %v84
    %172 = vmatpush.msra.mxu0 %v83
    %173 = vmatpush.msra.mxu0 %v82
    %174 = vmatpush.msra.mxu0 %v81
    %175 = vmatpush.msra.mxu0 %v80
    %176 = vmatpush.msra.mxu0 %v79
    %177 = vmatpush.msra.mxu0 %v78
    %178 = vmatpush.msra.mxu0 %v77
    %179 = vmatpush.msra.mxu0 %v76
    %180 = vmatpush.msra.mxu0 %v75
    %181 = vmatpush.msra.mxu0 %v74
    %182 = vmatpush.msra.mxu0 %v73
    %183 = vmatpush.msra.mxu0 %v72
    %184 = vmatpush.msra.mxu0 %v71
    %185 = vmatmul.f32.gmra.mxu0 %v165
    %v186 = vpop.f32.mrf.mxu0
    %v187 = vadd.f32 0.0, %v186
    %188 = vdwg.mxu0
    %189 = vmatpush.msra.mxu0 %v102
    %190 = vmatpush.msra.mxu0 %v101
    %191 = vmatpush.msra.mxu0 %v100
    %192 = vmatpush.msra.mxu0 %v99
    %193 = vmatpush.msra.mxu0 %v98
    %194 = vmatpush.msra.mxu0 %v97
    %195 = vmatpush.msra.mxu0 %v96
    %196 = vmatpush.msra.mxu0 %v95
    %197 = vmatpush.msra.mxu0 %v94
    %198 = vmatpush.msra.mxu0 %v93
    %199 = vmatpush.msra.mxu0 %v92
    %200 = vmatpush.msra.mxu0 %v91
    %201 = vmatpush.msra.mxu0 %v90
    %202 = vmatpush.msra.mxu0 %v89
    %203 = vmatpush.msra.mxu0 %v88
    %204 = vmatpush.msra.mxu0 %v87
    %205 = vmatmul.f32.gmra.mxu0 %v166
    %v206 = vpop.f32.mrf.mxu0
    %v207 = vadd.f32 %v187, %v206
    %208 = vdwg.mxu0
    %210 = vset.pattern.permute.xlu0 0
    %211 = vperm.xlu0 %210, %v112
    %v212 = vpop.permute.xlu0 %211
    %vm214 = vcmask 31744
    %v216 = vsel %vm214, %v111, 0
    %vm218 = vcmask 1043456
    %v220 = vsel %vm218, %v162, 0
    %222 = vmatpush.msra.mxu0 0.0
    %223 = vmatpush.msra.mxu0 0.0
    %224 = vmatpush.msra.mxu0 0.0
    %225 = vmatpush.msra.mxu0 0.0
    %226 = vmatpush.msra.mxu0 0.0
    %227 = vmatpush.msra.mxu0 0.0
    %228 = vmatpush.msra.mxu0 0.0
    %229 = vmatpush.msra.mxu0 0.0
    %230 = vmatpush.msra.mxu0 0.0
    %231 = vmatpush.msra.mxu0 0.0
    %232 = vmatpush.msra.mxu0 0.0
    %233 = vmatpush.msra.mxu0 0.0
    %234 = vmatpush.msra.mxu0 0.0
    %235 = vmatpush.msra.mxu0 0.0
    %236 = vmatpush.msra.mxu0 0.0
    %237 = vmatpush.msra.mxu0 %v220
    %238 = vmatmul.f32.gmra.mxu0 %v216
    %v239 = vpop.f32.mrf.mxu0
    %v240 = vadd.f32 %v212, %v239
    %241 = vdwg.mxu0
    %v243 = vsel %vm218, %v207, 0
    %245 = vmatpush.msra.mxu0 0.0
    %246 = vmatpush.msra.mxu0 0.0
    %247 = vmatpush.msra.mxu0 0.0
    %248 = vmatpush.msra.mxu0 0.0
    %249 = vmatpush.msra.mxu0 0.0
    %250 = vmatpush.msra.mxu0 0.0
    %251 = vmatpush.msra.mxu0 0.0
    %252 = vmatpush.msra.mxu0 0.0
    %253 = vmatpush.msra.mxu0 0.0
    %254 = vmatpush.msra.mxu0 0.0
    %255 = vmatpush.msra.mxu0 0.0
    %256 = vmatpush.msra.mxu0 0.0
    %257 = vmatpush.msra.mxu0 0.0
    %258 = vmatpush.msra.mxu0 0.0
    %259 = vmatpush.msra.mxu0 0.0
    %260 = vmatpush.msra.mxu0 %v243
    %261 = vmatmul.f32.gmra.mxu0 %v216
    %v262 = vpop.f32.mrf.mxu0
    %v263 = vadd.f32 %v212, %v262
    %264 = vdwg.mxu0
    %v265 = vadd.f32 %v240, 3.0
    %v266 = vmax.f32 %v265, 0.0
    %v267 = vmin.f32 %v266, 6.0
    %v268 = vmul.f32 %v240, %v267
    %v269 = vmul.f32 %v268, 0.16666667
    %v270 = vadd.f32 %v263, 3.0
    %v271 = vmax.f32 %v270, 0.0
    %v272 = vmin.f32 %v271, 6.0
    %v273 = vmul.f32 %v263, %v272
    %v274 = vmul.f32 %v273, 0.16666667
    %276 = vset.pattern.permute.xlu0 0
    %277 = vperm.xlu0 %276, %v114
    %v278 = vpop.permute.xlu0 %277
    %vm280 = vcmask 64512
    %v282 = vsel %vm280, %v113, 0
    %284 = vmatpush.msra.mxu0 0.0
    %285 = vmatpush.msra.mxu0 0.0
    %286 = vmatpush.msra.mxu0 0.0
    %287 = vmatpush.msra.mxu0 0.0
    %288 = vmatpush.msra.mxu0 0.0
    %289 = vmatpush.msra.mxu0 0.0
    %290 = vmatpush.msra.mxu0 0.0
    %291 = vmatpush.msra.mxu0 0.0
    %292 = vmatpush.msra.mxu0 0.0
    %293 = vmatpush.msra.mxu0 0.0
    %294 = vmatpush.msra.mxu0 0.0
    %295 = vmatpush.msra.mxu0 0.0
    %296 = vmatpush.msra.mxu0 0.0
    %297 = vmatpush.msra.mxu0 0.0
    %298 = vmatpush.msra.mxu0 0.0
    %299 = vmatpush.msra.mxu0 %v269
    %300 = vmatmul.f32.gmra.mxu0 %v282
    %v301 = vpop.f32.mrf.mxu0
    %v302 = vadd.f32 %v278, %v301
    %303 = vdwg.mxu0
    %v304 = vxor.u32 %v302, 2147483648
    %v305 = vmul.f32 %v304, 1.442695
    %v306 = vpow.pop %v305
    %v307 = vadd.f32 %v306, 1.0
    %v308 = vrcp.pop %v307
    %v309 = vmul.f32 %v307, %v308
    %v310 = vsub.f32 1.0, %v309
    %v311 = vmul.f32 %v308, %v310
    %v312 = vadd.f32 %v308, %v311
    %vm313 = vweird.f32 %v307
    %vm314 = vweird.f32 %v308
    %vm315 = vmor %vm313, %vm314
    %v316 = vsel %vm315, %v308, %v312
    %v317 = vand.u32 2147483647, %v307
    %vm318 = vcmp.eq.f32.partialorder %v317, 8.507059e+37
    %v319 = vand.u32 %v307, 2147483648
    %v320 = vor.u32 1.1754944e-38, %v319
    %v321 = vsel %vm318, %v320, %v316
    %v322 = vmul.f32 1.0, %v321
    %324 = vset.pattern.permute.xlu0 0
    %325 = vperm.xlu0 %324, %v116
    %v326 = vpop.permute.xlu0 %325
    %v329 = vsel %vm280, %v115, 0
    %331 = vmatpush.msra.mxu0 0.0
    %332 = vmatpush.msra.mxu0 0.0
    %333 = vmatpush.msra.mxu0 0.0
    %334 = vmatpush.msra.mxu0 0.0
    %335 = vmatpush.msra.mxu0 0.0
    %336 = vmatpush.msra.mxu0 0.0
    %337 = vmatpush.msra.mxu0 0.0
    %338 = vmatpush.msra.mxu0 0.0
    %339 = vmatpush.msra.mxu0 0.0
    %340 = vmatpush.msra.mxu0 0.0
    %341 = vmatpush.msra.mxu0 0.0
    %342 = vmatpush.msra.mxu0 0.0
    %343 = vmatpush.msra.mxu0 0.0
    %344 = vmatpush.msra.mxu0 0.0
    %345 = vmatpush.msra.mxu0 0.0
    %346 = vmatpush.msra.mxu0 %v274
    %347 = vmatmul.f32.gmra.mxu0 %v329
    %v348 = vpop.f32.mrf.mxu0
    %v349 = vadd.f32 %v326, %v348
    %350 = vdwg.mxu0
    %v351 = vxor.u32 %v349, 2147483648
    %v352 = vmul.f32 %v351, 1.442695
    %v353 = vpow.pop %v352
    %v354 = vadd.f32 %v353, 1.0
    %v355 = vrcp.pop %v354
    %v356 = vmul.f32 %v354, %v355
    %v357 = vsub.f32 1.0, %v356
    %v358 = vmul.f32 %v355, %v357
    %v359 = vadd.f32 %v355, %v358
    %vm360 = vweird.f32 %v354
    %vm361 = vweird.f32 %v355
    %vm362 = vmor %vm360, %vm361
    %v363 = vsel %vm362, %v355, %v359
    %v364 = vand.u32 2147483647, %v354
    %vm365 = vcmp.eq.f32.partialorder %v364, 8.507059e+37
    %v366 = vand.u32 %v354, 2147483648
    %v367 = vor.u32 1.1754944e-38, %v366
    %v368 = vsel %vm365, %v367, %v363
    %v369 = vmul.f32 1.0, %v368
    %vm370 = vcmask 130048
    %v372 = vsel %vm370, %v322, 0
    %374 = vmatpush.msra.mxu0 0.0
    %375 = vmatpush.msra.mxu0 0.0
    %376 = vmatpush.msra.mxu0 0.0
    %377 = vmatpush.msra.mxu0 0.0
    %378 = vmatpush.msra.mxu0 0.0
    %379 = vmatpush.msra.mxu0 0.0
    %380 = vmatpush.msra.mxu0 0.0
    %381 = vmatpush.msra.mxu0 0.0
    %382 = vmatpush.msra.mxu0 0.0
    %383 = vmatpush.msra.mxu0 0.0
    %384 = vmatpush.msra.mxu0 0.0
    %385 = vmatpush.msra.mxu0 0.0
    %386 = vmatpush.msra.mxu0 0.0
    %387 = vmatpush.msra.mxu0 0.0
    %388 = vmatpush.msra.mxu0 %v105
    %389 = vmatpush.msra.mxu0 %v103
    %390 = vmatmul.f32.gmra.mxu0 %v372
    %v391 = vpop.f32.mrf.mxu0
    %v392 = vadd.f32 0.0, %v391
    %393 = vdwg.mxu0
    %394 = vmatpush.msra.mxu0 0.0
    %395 = vmatpush.msra.mxu0 0.0
    %396 = vmatpush.msra.mxu0 0.0
    %397 = vmatpush.msra.mxu0 0.0
    %398 = vmatpush.msra.mxu0 0.0
    %399 = vmatpush.msra.mxu0 0.0
    %400 = vmatpush.msra.mxu0 0.0
    %401 = vmatpush.msra.mxu0 0.0
    %402 = vmatpush.msra.mxu0 0.0
    %403 = vmatpush.msra.mxu0 0.0
    %404 = vmatpush.msra.mxu0 0.0
    %405 = vmatpush.msra.mxu0 0.0
    %406 = vmatpush.msra.mxu0 0.0
    %407 = vmatpush.msra.mxu0 0.0
    %408 = vmatpush.msra.mxu0 %v106
    %409 = vmatpush.msra.mxu0 %v104
    %410 = vmatmul.f32.gmra.mxu0 %v372
    %v411 = vpop.f32.mrf.mxu0
    %v412 = vadd.f32 0.0, %v411
    %413 = vdwg.mxu0
    %v415 = vsel %vm370, %v369, 0
    %417 = vmatpush.msra.mxu0 0.0
    %418 = vmatpush.msra.mxu0 0.0
    %419 = vmatpush.msra.mxu0 0.0
    %420 = vmatpush.msra.mxu0 0.0
    %421 = vmatpush.msra.mxu0 0.0
    %422 = vmatpush.msra.mxu0 0.0
    %423 = vmatpush.msra.mxu0 0.0
    %424 = vmatpush.msra.mxu0 0.0
    %425 = vmatpush.msra.mxu0 0.0
    %426 = vmatpush.msra.mxu0 0.0
    %427 = vmatpush.msra.mxu0 0.0
    %428 = vmatpush.msra.mxu0 0.0
    %429 = vmatpush.msra.mxu0 0.0
    %430 = vmatpush.msra.mxu0 0.0
    %431 = vmatpush.msra.mxu0 %v109
    %432 = vmatpush.msra.mxu0 %v107
    %433 = vmatmul.f32.gmra.mxu0 %v415
    %v434 = vpop.f32.mrf.mxu0
    %v435 = vadd.f32 0.0, %v434
    %436 = vdwg.mxu0
    %437 = vmatpush.msra.mxu0 0.0
    %438 = vmatpush.msra.mxu0 0.0
    %439 = vmatpush.msra.mxu0 0.0
    %440 = vmatpush.msra.mxu0 0.0
    %441 = vmatpush.msra.mxu0 0.0
    %442 = vmatpush.msra.mxu0 0.0
    %443 = vmatpush.msra.mxu0 0.0
    %444 = vmatpush.msra.mxu0 0.0
    %445 = vmatpush.msra.mxu0 0.0
    %446 = vmatpush.msra.mxu0 0.0
    %447 = vmatpush.msra.mxu0 0.0
    %448 = vmatpush.msra.mxu0 0.0
    %449 = vmatpush.msra.mxu0 0.0
    %450 = vmatpush.msra.mxu0 0.0
    %451 = vmatpush.msra.mxu0 %v110
    %452 = vmatpush.msra.mxu0 %v108
    %453 = vmatmul.f32.gmra.mxu0 %v415
    %v454 = vpop.f32.mrf.mxu0
    %v455 = vadd.f32 0.0, %v454
    %456 = vdwg.mxu0
    %v459 = vrot.slane %v412, 4
    %v460 = vsel %vm218, %v392, %v459
    %v462 = vmul.f32 %v117, %v460
    %v465 = vrot.slane %v455, 4
    %v466 = vsel %vm218, %v435, %v465
    %v468 = vmul.f32 %v462, %v466
    %469 = vst [vmem:[#allocation2] sm:$0xff] %v468
    %s470 = scalar_lea.vmem %s0, 8
    %v471 = vld [vmem:[%s470] sm:$0xff]
    %473 = vst [vmem:[#allocation1] ss:$2 sm:$0xff] %v471
    %v474 = vld.sshfl [vmem:[#allocation1] sm:$0xff pattern:$0x75316420]
    %v475 = vld.sshfl [vmem:[#allocation1 + $0x8] sm:$0xff pattern:$0x75316420]
    %478 = vmatpush.msra.mxu0 %v54
    %479 = vmatpush.msra.mxu0 %v53
    %480 = vmatpush.msra.mxu0 %v52
    %481 = vmatpush.msra.mxu0 %v51
    %482 = vmatpush.msra.mxu0 %v50
    %483 = vmatpush.msra.mxu0 %v49
    %484 = vmatpush.msra.mxu0 %v48
    %485 = vmatpush.msra.mxu0 %v47
    %486 = vmatpush.msra.mxu0 %v46
    %487 = vmatpush.msra.mxu0 %v45
    %488 = vmatpush.msra.mxu0 %v44
    %489 = vmatpush.msra.mxu0 %v43
    %490 = vmatpush.msra.mxu0 %v42
    %491 = vmatpush.msra.mxu0 %v41
    %492 = vmatpush.msra.mxu0 %v40
    %493 = vmatpush.msra.mxu0 %v39
    %494 = vmatmul.f32.gmra.mxu0 %v474
    %v495 = vpop.f32.mrf.mxu0
    %v496 = vadd.f32 0.0, %v495
    %497 = vdwg.mxu0
    %498 = vmatpush.msra.mxu0 %v70
    %499 = vmatpush.msra.mxu0 %v69
    %500 = vmatpush.msra.mxu0 %v68
    %501 = vmatpush.msra.mxu0 %v67
    %502 = vmatpush.msra.mxu0 %v66
    %503 = vmatpush.msra.mxu0 %v65
    %504 = vmatpush.msra.mxu0 %v64
    %505 = vmatpush.msra.mxu0 %v63
    %506 = vmatpush.msra.mxu0 %v62
    %507 = vmatpush.msra.mxu0 %v61
    %508 = vmatpush.msra.mxu0 %v60
    %509 = vmatpush.msra.mxu0 %v59
    %510 = vmatpush.msra.mxu0 %v58
    %511 = vmatpush.msra.mxu0 %v57
    %512 = vmatpush.msra.mxu0 %v56
    %513 = vmatpush.msra.mxu0 %v55
    %514 = vmatmul.f32.gmra.mxu0 %v475
    %v515 = vpop.f32.mrf.mxu0
    %v516 = vadd.f32 %v496, %v515
    %517 = vdwg.mxu0
    %518 = vst [vmem:[#allocation1] ss:$2 sm:$0xff] %v471
    %v519 = vld.sshfl [vmem:[#allocation1] sm:$0xff pattern:$0x75316420]
    %v520 = vld.sshfl [vmem:[#allocation1 + $0x8] sm:$0xff pattern:$0x75316420]
    %523 = vmatpush.msra.mxu0 %v86
    %524 = vmatpush.msra.mxu0 %v85
    %525 = vmatpush.msra.mxu0 %v84
    %526 = vmatpush.msra.mxu0 %v83
    %527 = vmatpush.msra.mxu0 %v82
    %528 = vmatpush.msra.mxu0 %v81
    %529 = vmatpush.msra.mxu0 %v80
    %530 = vmatpush.msra.mxu0 %v79
    %531 = vmatpush.msra.mxu0 %v78
    %532 = vmatpush.msra.mxu0 %v77
    %533 = vmatpush.msra.mxu0 %v76
    %534 = vmatpush.msra.mxu0 %v75
    %535 = vmatpush.msra.mxu0 %v74
    %536 = vmatpush.msra.mxu0 %v73
    %537 = vmatpush.msra.mxu0 %v72
    %538 = vmatpush.msra.mxu0 %v71
    %539 = vmatmul.f32.gmra.mxu0 %v519
    %v540 = vpop.f32.mrf.mxu0
    %v541 = vadd.f32 0.0, %v540
    %542 = vdwg.mxu0
    %543 = vmatpush.msra.mxu0 %v102
    %544 = vmatpush.msra.mxu0 %v101
    %545 = vmatpush.msra.mxu0 %v100
    %546 = vmatpush.msra.mxu0 %v99
    %547 = vmatpush.msra.mxu0 %v98
    %548 = vmatpush.msra.mxu0 %v97
    %549 = vmatpush.msra.mxu0 %v96
    %550 = vmatpush.msra.mxu0 %v95
    %551 = vmatpush.msra.mxu0 %v94
    %552 = vmatpush.msra.mxu0 %v93
    %553 = vmatpush.msra.mxu0 %v92
    %554 = vmatpush.msra.mxu0 %v91
    %555 = vmatpush.msra.mxu0 %v90
    %556 = vmatpush.msra.mxu0 %v89
    %557 = vmatpush.msra.mxu0 %v88
    %558 = vmatpush.msra.mxu0 %v87
    %559 = vmatmul.f32.gmra.mxu0 %v520
    %v560 = vpop.f32.mrf.mxu0
    %v561 = vadd.f32 %v541, %v560
    %562 = vdwg.mxu0
    %v564 = vsel %vm218, %v516, 0
    %566 = vmatpush.msra.mxu0 0.0
    %567 = vmatpush.msra.mxu0 0.0
    %568 = vmatpush.msra.mxu0 0.0
    %569 = vmatpush.msra.mxu0 0.0
    %570 = vmatpush.msra.mxu0 0.0
    %571 = vmatpush.msra.mxu0 0.0
    %572 = vmatpush.msra.mxu0 0.0
    %573 = vmatpush.msra.mxu0 0.0
    %574 = vmatpush.msra.mxu0 0.0
    %575 = vmatpush.msra.mxu0 0.0
    %576 = vmatpush.msra.mxu0 0.0
    %577 = vmatpush.msra.mxu0 0.0
    %578 = vmatpush.msra.mxu0 0.0
    %579 = vmatpush.msra.mxu0 0.0
    %580 = vmatpush.msra.mxu0 0.0
    %581 = vmatpush.msra.mxu0 %v564
    %582 = vmatmul.f32.gmra.mxu0 %v216
    %v583 = vpop.f32.mrf.mxu0
    %v584 = vadd.f32 %v212, %v583
    %585 = vdwg.mxu0
    %v587 = vsel %vm218, %v561, 0
    %589 = vmatpush.msra.mxu0 0.0
    %590 = vmatpush.msra.mxu0 0.0
    %591 = vmatpush.msra.mxu0 0.0
    %592 = vmatpush.msra.mxu0 0.0
    %593 = vmatpush.msra.mxu0 0.0
    %594 = vmatpush.msra.mxu0 0.0
    %595 = vmatpush.msra.mxu0 0.0
    %596 = vmatpush.msra.mxu0 0.0
    %597 = vmatpush.msra.mxu0 0.0
    %598 = vmatpush.msra.mxu0 0.0
    %599 = vmatpush.msra.mxu0 0.0
    %600 = vmatpush.msra.mxu0 0.0
    %601 = vmatpush.msra.mxu0 0.0
    %602 = vmatpush.msra.mxu0 0.0
    %603 = vmatpush.msra.mxu0 0.0
    %604 = vmatpush.msra.mxu0 %v587
    %605 = vmatmul.f32.gmra.mxu0 %v216
    %v606 = vpop.f32.mrf.mxu0
    %v607 = vadd.f32 %v212, %v606
    %608 = vdwg.mxu0
    %v609 = vadd.f32 %v584, 3.0
    %v610 = vmax.f32 %v609, 0.0
    %v611 = vmin.f32 %v610, 6.0
    %v612 = vmul.f32 %v584, %v611
    %v613 = vmul.f32 %v612, 0.16666667
    %v614 = vadd.f32 %v607, 3.0
    %v615 = vmax.f32 %v614, 0.0
    %v616 = vmin.f32 %v615, 6.0
    %v617 = vmul.f32 %v607, %v616
    %v618 = vmul.f32 %v617, 0.16666667
    %619 = vmatpush.msra.mxu0 0.0
    %620 = vmatpush.msra.mxu0 0.0
    %621 = vmatpush.msra.mxu0 0.0
    %622 = vmatpush.msra.mxu0 0.0
    %623 = vmatpush.msra.mxu0 0.0
    %624 = vmatpush.msra.mxu0 0.0
    %625 = vmatpush.msra.mxu0 0.0
    %626 = vmatpush.msra.mxu0 0.0
    %627 = vmatpush.msra.mxu0 0.0
    %628 = vmatpush.msra.mxu0 0.0
    %629 = vmatpush.msra.mxu0 0.0
    %630 = vmatpush.msra.mxu0 0.0
    %631 = vmatpush.msra.mxu0 0.0
    %632 = vmatpush.msra.mxu0 0.0
    %633 = vmatpush.msra.mxu0 0.0
    %634 = vmatpush.msra.mxu0 %v613
    %635 = vmatmul.f32.gmra.mxu0 %v282
    %v636 = vpop.f32.mrf.mxu0
    %v637 = vadd.f32 %v278, %v636
    %638 = vdwg.mxu0
    %v639 = vxor.u32 %v637, 2147483648
    %v640 = vmul.f32 %v639, 1.442695
    %v641 = vpow.pop %v640
    %v642 = vadd.f32 %v641, 1.0
    %v643 = vrcp.pop %v642
    %v644 = vmul.f32 %v642, %v643
    %v645 = vsub.f32 1.0, %v644
    %v646 = vmul.f32 %v643, %v645
    %v647 = vadd.f32 %v643, %v646
    %vm648 = vweird.f32 %v642
    %vm649 = vweird.f32 %v643
    %vm650 = vmor %vm648, %vm649
    %v651 = vsel %vm650, %v643, %v647
    %v652 = vand.u32 2147483647, %v642
    %vm653 = vcmp.eq.f32.partialorder %v652, 8.507059e+37
    %v654 = vand.u32 %v642, 2147483648
    %v655 = vor.u32 1.1754944e-38, %v654
    %v656 = vsel %vm653, %v655, %v651
    %v657 = vmul.f32 1.0, %v656
    %658 = vmatpush.msra.mxu0 0.0
    %659 = vmatpush.msra.mxu0 0.0
    %660 = vmatpush.msra.mxu0 0.0
    %661 = vmatpush.msra.mxu0 0.0
    %662 = vmatpush.msra.mxu0 0.0
    %663 = vmatpush.msra.mxu0 0.0
    %664 = vmatpush.msra.mxu0 0.0
    %665 = vmatpush.msra.mxu0 0.0
    %666 = vmatpush.msra.mxu0 0.0
    %667 = vmatpush.msra.mxu0 0.0
    %668 = vmatpush.msra.mxu0 0.0
    %669 = vmatpush.msra.mxu0 0.0
    %670 = vmatpush.msra.mxu0 0.0
    %671 = vmatpush.msra.mxu0 0.0
    %672 = vmatpush.msra.mxu0 0.0
    %673 = vmatpush.msra.mxu0 %v618
    %674 = vmatmul.f32.gmra.mxu0 %v329
    %v675 = vpop.f32.mrf.mxu0
    %v676 = vadd.f32 %v326, %v675
    %677 = vdwg.mxu0
    %v678 = vxor.u32 %v676, 2147483648
    %v679 = vmul.f32 %v678, 1.442695
    %v680 = vpow.pop %v679
    %v681 = vadd.f32 %v680, 1.0
    %v682 = vrcp.pop %v681
    %v683 = vmul.f32 %v681, %v682
    %v684 = vsub.f32 1.0, %v683
    %v685 = vmul.f32 %v682, %v684
    %v686 = vadd.f32 %v682, %v685
    %vm687 = vweird.f32 %v681
    %vm688 = vweird.f32 %v682
    %vm689 = vmor %vm687, %vm688
    %v690 = vsel %vm689, %v682, %v686
    %v691 = vand.u32 2147483647, %v681
    %vm692 = vcmp.eq.f32.partialorder %v691, 8.507059e+37
    %v693 = vand.u32 %v681, 2147483648
    %v694 = vor.u32 1.1754944e-38, %v693
    %v695 = vsel %vm692, %v694, %v690
    %v696 = vmul.f32 1.0, %v695
    %v698 = vsel %vm370, %v657, 0
    %700 = vmatpush.msra.mxu0 0.0
    %701 = vmatpush.msra.mxu0 0.0
    %702 = vmatpush.msra.mxu0 0.0
    %703 = vmatpush.msra.mxu0 0.0
    %704 = vmatpush.msra.mxu0 0.0
    %705 = vmatpush.msra.mxu0 0.0
    %706 = vmatpush.msra.mxu0 0.0
    %707 = vmatpush.msra.mxu0 0.0
    %708 = vmatpush.msra.mxu0 0.0
    %709 = vmatpush.msra.mxu0 0.0
    %710 = vmatpush.msra.mxu0 0.0
    %711 = vmatpush.msra.mxu0 0.0
    %712 = vmatpush.msra.mxu0 0.0
    %713 = vmatpush.msra.mxu0 0.0
    %714 = vmatpush.msra.mxu0 %v105
    %715 = vmatpush.msra.mxu0 %v103
    %716 = vmatmul.f32.gmra.mxu0 %v698
    %v717 = vpop.f32.mrf.mxu0
    %v718 = vadd.f32 0.0, %v717
    %719 = vdwg.mxu0
    %720 = vmatpush.msra.mxu0 0.0
    %721 = vmatpush.msra.mxu0 0.0
    %722 = vmatpush.msra.mxu0 0.0
    %723 = vmatpush.msra.mxu0 0.0
    %724 = vmatpush.msra.mxu0 0.0
    %725 = vmatpush.msra.mxu0 0.0
    %726 = vmatpush.msra.mxu0 0.0
    %727 = vmatpush.msra.mxu0 0.0
    %728 = vmatpush.msra.mxu0 0.0
    %729 = vmatpush.msra.mxu0 0.0
    %730 = vmatpush.msra.mxu0 0.0
    %731 = vmatpush.msra.mxu0 0.0
    %732 = vmatpush.msra.mxu0 0.0
    %733 = vmatpush.msra.mxu0 0.0
    %734 = vmatpush.msra.mxu0 %v106
    %735 = vmatpush.msra.mxu0 %v104
    %736 = vmatmul.f32.gmra.mxu0 %v698
    %v737 = vpop.f32.mrf.mxu0
    %v738 = vadd.f32 0.0, %v737
    %739 = vdwg.mxu0
    %v741 = vsel %vm370, %v696, 0
    %743 = vmatpush.msra.mxu0 0.0
    %744 = vmatpush.msra.mxu0 0.0
    %745 = vmatpush.msra.mxu0 0.0
    %746 = vmatpush.msra.mxu0 0.0
    %747 = vmatpush.msra.mxu0 0.0
    %748 = vmatpush.msra.mxu0 0.0
    %749 = vmatpush.msra.mxu0 0.0
    %750 = vmatpush.msra.mxu0 0.0
    %751 = vmatpush.msra.mxu0 0.0
    %752 = vmatpush.msra.mxu0 0.0
    %753 = vmatpush.msra.mxu0 0.0
    %754 = vmatpush.msra.mxu0 0.0
    %755 = vmatpush.msra.mxu0 0.0
    %756 = vmatpush.msra.mxu0 0.0
    %757 = vmatpush.msra.mxu0 %v109
    %758 = vmatpush.msra.mxu0 %v107
    %759 = vmatmul.f32.gmra.mxu0 %v741
    %v760 = vpop.f32.mrf.mxu0
    %v761 = vadd.f32 0.0, %v760
    %762 = vdwg.mxu0
    %763 = vmatpush.msra.mxu0 0.0
    %764 = vmatpush.msra.mxu0 0.0
    %765 = vmatpush.msra.mxu0 0.0
    %766 = vmatpush.msra.mxu0 0.0
    %767 = vmatpush.msra.mxu0 0.0
    %768 = vmatpush.msra.mxu0 0.0
    %769 = vmatpush.msra.mxu0 0.0
    %770 = vmatpush.msra.mxu0 0.0
    %771 = vmatpush.msra.mxu0 0.0
    %772 = vmatpush.msra.mxu0 0.0
    %773 = vmatpush.msra.mxu0 0.0
    %774 = vmatpush.msra.mxu0 0.0
    %775 = vmatpush.msra.mxu0 0.0
    %776 = vmatpush.msra.mxu0 0.0
    %777 = vmatpush.msra.mxu0 %v110
    %778 = vmatpush.msra.mxu0 %v108
    %779 = vmatmul.f32.gmra.mxu0 %v741
    %v780 = vpop.f32.mrf.mxu0
    %v781 = vadd.f32 0.0, %v780
    %782 = vdwg.mxu0
    %v785 = vrot.slane %v738, 4
    %v786 = vsel %vm218, %v718, %v785
    %v788 = vmul.f32 %v471, %v786
    %v791 = vrot.slane %v781, 4
    %v792 = vsel %vm218, %v761, %v791
    %v794 = vmul.f32 %v788, %v792
    %s795 = scalar_lea.vmem [#allocation2], 8
    %796 = vst [vmem:[%s795] sm:$0xff] %v794
    // Predicated region
    $region46: #{tpu_custom_call.1} parent=1 // pred_check
      _
    $region47: #{tpu_custom_call.1} parent=1 // pred_check_branch
      %798 = sbr.rel (0) target = $region49
    $region48: #{tpu_custom_call.1} parent=1 // pred_region
      %800 = vsyncadd [#allocation3], 0
      %s801 = sshll.u32 [#allocation2], 4
      %s802 = int_to_ptr.vmem [resolvable:$true] %s801
      %s803 = sshll.u32 %s11, 4
      %s804 = int_to_ptr.hbm [resolvable:$true] %s803
      %809 = dma.vmem_to_hbm [thread:$0]  %s802, 256, %s804, [#allocation3], 128, 128, 8
    $region49: #{tpu_custom_call.1} parent=1 // pred_fallthru
      _
    // Predicated region
    $region50: #{tpu_custom_call.1} parent=1 // pred_check
      _
    $region51: #{tpu_custom_call.1} parent=1 // pred_check_branch
      %811 = sbr.rel (0) target = $region53
    $region52: #{tpu_custom_call.1} parent=1 // pred_region
      %813 = dma.done [#allocation3], 256
    $region53: #{tpu_custom_call.1} parent=1 // pred_fallthru
      _
    %814 = vsyncpa [#allocation3], 1

</llo_original>
